<compile_context>
chip_gen: v5e
topology: v5e:2x2
jax: 0.10.0
libtpu: 0.0.40
codegen_flags: <defaults>
</compile_context>

<pallas_src>
import functools

import jax
import jax.numpy as jnp
from jax import lax
from jax.experimental import pallas as pl
from jax.experimental.pallas import tpu as pltpu

CONF = [28 * 28, 100, 25, 10]
D_IN, H1, H2, D_OUT = CONF
LANE = 128              # pad contraction / hidden dims to the TPU lane width
DEFAULT_TILE_B = 1024   # batch rows per grid step (review: 1024-2048)
_MIN_TILE = 16          # multiple of 16 -> legal sublane tiling for f32 and bf16


def _round_up(n, m):
    return ((n + m - 1) // m) * m


def _batch_tiling(batch, tile_b):
    """Pick (rows_fed_to_kernel, tile_rows).

    * batch <= 16: pad to one 16-row tile (negligible cost).
    * otherwise: no padding at all; grid = ceil(batch / tb) and the ragged last
      tile is masked inside the kernel.  At least 2 grid steps are used so the
      "parallel" axis can be sharded across v7x's 2 TensorCores.
    """
    if batch <= _MIN_TILE:
        return _MIN_TILE, _MIN_TILE
    n_steps = max(pl.cdiv(batch, tile_b), 2)
    tb = min(_round_up(pl.cdiv(batch, n_steps), _MIN_TILE),
             _round_up(batch, _MIN_TILE))
    return batch, tb


def _net_kernel(x_ref, img_ref,
                w1_ref, b1_ref,
                w2_ref, b2_ref,
                w3_ref, b3_ref,
                out_ref, *, total_rows, tile_rows):
    """One batch tile: clamp(x + img) -> fc1+relu -> fc2+relu -> fc3."""
    # Perturbation + clamp in f32 (faithful to torch.clamp(x + img, 0, 1)),
    # regardless of the (possibly bf16) storage dtype of x.
    x = jnp.clip(x_ref[...].astype(jnp.float32) + img_ref[...], 0.0, 1.0)

    # fc1 + relu: (tb, 784)bf16 @ (784, 128)bf16 -> f32 accumulate, f32 bias.
    h = jnp.dot(x.astype(jnp.bfloat16), w1_ref[...],
                preferred_element_type=jnp.float32)
    h = jnp.maximum(h + b1_ref[...], 0.0)

    # fc2 + relu: (tb, 128) @ (128, 128)
    h = jnp.dot(h.astype(jnp.bfloat16), w2_ref[...],
                preferred_element_type=jnp.float32)
    h = jnp.maximum(h + b2_ref[...], 0.0)

    # fc3 (no activation): output kept at its natural 10-wide shape.
    logits = jnp.dot(h.astype(jnp.bfloat16), w3_ref[...],
                     preferred_element_type=jnp.float32) + b3_ref[...]

    if total_rows % tile_rows != 0:
        # Ragged last tile: rows past the end of x were loaded as garbage.
        # Zero them so nothing unclean ever reaches the (clipped) write-back.
        row = (lax.broadcasted_iota(jnp.int32, logits.shape, 0)
               + pl.program_id(0) * tile_rows)
        logits = jnp.where(row < total_rows, logits, 0.0)

    out_ref[...] = logits


def _pad2d(a, rows, cols):
    r, c = a.shape
    return jnp.pad(a, ((0, rows - r), (0, cols - c)))


def _prepare_params(params):
    """Zero-pad contraction/hidden dims to 128; weights -> bf16, biases/img f32."""
    img = params["img"].astype(jnp.float32)                        # (1, 784)
    w1 = _pad2d(params["w1"], D_IN, LANE).astype(jnp.bfloat16)     # (784, 128)
    b1 = _pad2d(params["b1"], 1, LANE).astype(jnp.float32)         # (1, 128)
    w2 = _pad2d(params["w2"], LANE, LANE).astype(jnp.bfloat16)     # (128, 128)
    b2 = _pad2d(params["b2"], 1, LANE).astype(jnp.float32)         # (1, 128)
    w3 = _pad2d(params["w3"], LANE, D_OUT).astype(jnp.bfloat16)    # (128, 10)
    b3 = params["b3"].astype(jnp.float32)                          # (1, 10)
    return img, w1, b1, w2, b2, w3, b3


@functools.partial(jax.jit, static_argnames=("tile_b", "x_dtype"))
def net_forward(x, params, *, tile_b=DEFAULT_TILE_B, x_dtype=jnp.bfloat16):
    """x: (B, 784).  Returns (B, 10) float32 logits."""
    B, D = x.shape
    assert D == D_IN
    img, w1, b1, w2, b2, w3, b3 = _prepare_params(params)

    # x is the dominant HBM stream; bf16 halves the read and matches the bf16
    # MXU inputs below.  Under jit this convert fuses with x's producer — pass
    # x already as bf16 (or x_dtype=None) to avoid any standalone cast pass.
    if x_dtype is not None and x.dtype != x_dtype:
        x = x.astype(x_dtype)

    rows, tb = _batch_tiling(B, tile_b)
    if rows != B:                            # only for B <= 16: one tiny tile
        x = jnp.pad(x, ((0, rows - B), (0, 0)))
    grid = (pl.cdiv(rows, tb),)

    kernel = functools.partial(_net_kernel, total_rows=rows, tile_rows=tb)
    const = lambda i: (0, 0)   # weights/biases/img: constant block -> resident

    # Advisory cost estimate using the *physical* (lane-padded) layout.
    x_lanes = _round_up(D_IN, LANE)          # 784 -> 896
    flops = 2 * B * (D_IN * LANE + LANE * LANE + LANE * D_OUT)
    bytes_accessed = int(
        B * x_lanes * x.dtype.itemsize                      # dominant x read
        + B * LANE * 4                                      # output (10 -> 128)
        + (w1.size + w2.size + _round_up(D_OUT, LANE) * LANE) * 2   # bf16 weights
        + 3 * 8 * LANE * 4                                  # biases, sublane-padded
        + 8 * x_lanes * 4                                   # img
    )

    out = pl.pallas_call(
        kernel,
        out_shape=jax.ShapeDtypeStruct((rows, D_OUT), jnp.float32),
        grid=grid,
        in_specs=[
            pl.BlockSpec((tb, D_IN), lambda i: (i, 0)),   # x: tiled over batch
            pl.BlockSpec((1, D_IN), const),               # img
            pl.BlockSpec((D_IN, LANE), const),            # w1
            pl.BlockSpec((1, LANE), const),               # b1
            pl.BlockSpec((LANE, LANE), const),            # w2
            pl.BlockSpec((1, LANE), const),               # b2
            pl.BlockSpec((LANE, D_OUT), const),           # w3
            pl.BlockSpec((1, D_OUT), const),              # b3
        ],
        out_specs=pl.BlockSpec((tb, D_OUT), lambda i: (i, 0)),
        compiler_params=pltpu.CompilerParams(
            dimension_semantics=("parallel",),   # shard batch across TCs (v7x)
            vmem_limit_bytes=32 * 1024 * 1024,   # safe on v5e/v6e/v7x at tb=1024
        ),
        cost_estimate=pl.CostEstimate(
            flops=flops, transcendentals=0, bytes_accessed=bytes_accessed),
    )(x, img, w1, b1, w2, b2, w3, b3)

    return out[:B] if rows != B else out


def init_params(key):
    """torch.nn.Linear-style init (U[-1/sqrt(in), 1/sqrt(in)]); img starts at zeros."""
    params = {"img": jnp.zeros((1, D_IN), jnp.float32)}
    keys = jax.random.split(key, 2 * (len(CONF) - 1))
    for i, (fan_in, fan_out) in enumerate(zip(CONF[:-1], CONF[1:])):
        bound = 1.0 / (fan_in ** 0.5)
        wk, bk = keys[2 * i], keys[2 * i + 1]
        # Stored already transposed: (in, out), so the kernel does x @ W.
        params[f"w{i+1}"] = jax.random.uniform(
            wk, (fan_in, fan_out), jnp.float32, minval=-bound, maxval=bound)
        params[f"b{i+1}"] = jax.random.uniform(
            bk, (1, fan_out), jnp.float32, minval=-bound, maxval=bound)
    return params


def net_reference_f32(x, params):
    """Pure-f32 JAX reference of the same forward pass."""
    h = jnp.clip(x.astype(jnp.float32) + params["img"], 0.0, 1.0)
    h = jnp.maximum(h @ params["w1"] + params["b1"], 0.0)
    h = jnp.maximum(h @ params["w2"] + params["b2"], 0.0)
    return h @ params["w3"] + params["b3"]


def net_reference_kernel_numerics(x, params, x_dtype=jnp.bfloat16):
    """Reference emulating the kernel's bf16 input / bf16 dot / f32 accumulate."""
    rt = lambda a: a.astype(jnp.bfloat16).astype(jnp.float32)
    xs = x.astype(x_dtype) if x_dtype is not None else x
    h = jnp.clip(xs.astype(jnp.float32) + params["img"], 0.0, 1.0)
    h = jnp.maximum(rt(h) @ rt(params["w1"]) + params["b1"], 0.0)
    h = jnp.maximum(rt(h) @ rt(params["w2"]) + params["b2"], 0.0)
    return rt(h) @ rt(params["w3"]) + params["b3"]


if __name__ == "__main__":
    key = jax.random.PRNGKey(0)
    pkey, xkey = jax.random.split(key)
    params = init_params(pkey)

    # Two small deterministic cases:
    #   batch=8  -> tiny-batch path (single padded 16-row tile)
    #   batch=37 -> multi-step grid with a ragged, masked last tile
    for batch in (8, 37):
        x = jax.random.uniform(jax.random.fold_in(xkey, batch),
                               (batch, D_IN), jnp.float32)  # MNIST-like pixels

        out = jax.block_until_ready(net_forward(x, params))
        assert out.shape == (batch, D_OUT)

        # Tight check vs. a reference matching the kernel's bf16 numerics.
        ref_k = net_reference_kernel_numerics(x, params)
        assert jnp.allclose(out, ref_k, atol=2e-3, rtol=2e-3), \
            float(jnp.max(jnp.abs(out - ref_k)))
        # Loose sanity check vs. the pure-f32 math.
        ref_f32 = net_reference_f32(x, params)
        assert jnp.allclose(out, ref_f32, atol=5e-2, rtol=5e-2)

        # Also exercise the f32-input path (x_dtype=None keeps x as given).
        out_f32in = jax.block_until_ready(net_forward(x, params, x_dtype=None))
        ref_f32in = net_reference_kernel_numerics(x, params, x_dtype=None)
        assert jnp.allclose(out_f32in, ref_f32in, atol=2e-3, rtol=2e-3)

    print("KERNEL_OK")
</pallas_src>

<mosaic_0001>
module attributes {stable_mosaic.version = 11 : i64} {
  func.func @_net_kernel(%arg0: i32, %arg1: memref<16x784xbf16, #tpu.memory_space<vmem>>, %arg2: memref<1x784xf32, #tpu.memory_space<vmem>>, %arg3: memref<784x128xbf16, #tpu.memory_space<vmem>>, %arg4: memref<1x128xf32, #tpu.memory_space<vmem>>, %arg5: memref<128x128xbf16, #tpu.memory_space<vmem>>, %arg6: memref<1x128xf32, #tpu.memory_space<vmem>>, %arg7: memref<128x10xbf16, #tpu.memory_space<vmem>>, %arg8: memref<1x10xf32, #tpu.memory_space<vmem>>, %arg9: memref<16x10xf32, #tpu.memory_space<vmem>>) attributes {dimension_semantics = [#tpu.dimension_semantics<parallel>], iteration_bounds = array<i64: 1>, scalar_prefetch = 0 : i64, scratch_operands = 0 : i64, tpu.core_type = #tpu.core_type<tc>, window_params = [{transform_indices = @transform_0, window_bounds = array<i64: 16, 784>}, {pipeline_mode = #tpu.pipeline_mode<synchronous>, transform_indices = @transform_1, window_bounds = array<i64: 1, 784>}, {pipeline_mode = #tpu.pipeline_mode<synchronous>, transform_indices = @transform_2, window_bounds = array<i64: 784, 128>}, {pipeline_mode = #tpu.pipeline_mode<synchronous>, transform_indices = @transform_3, window_bounds = array<i64: 1, 128>}, {pipeline_mode = #tpu.pipeline_mode<synchronous>, transform_indices = @transform_4, window_bounds = array<i64: 128, 128>}, {pipeline_mode = #tpu.pipeline_mode<synchronous>, transform_indices = @transform_5, window_bounds = array<i64: 1, 128>}, {pipeline_mode = #tpu.pipeline_mode<synchronous>, transform_indices = @transform_6, window_bounds = array<i64: 128, 10>}, {pipeline_mode = #tpu.pipeline_mode<synchronous>, transform_indices = @transform_7, window_bounds = array<i64: 1, 10>}, {transform_indices = @transform_8, window_bounds = array<i64: 16, 10>}]} {
    %c0 = arith.constant 0 : index
    %c0_0 = arith.constant 0 : index
    %0 = vector.load %arg1[%c0, %c0_0] : memref<16x784xbf16, #tpu.memory_space<vmem>>, vector<16x784xbf16>
    %1 = arith.extf %0 : vector<16x784xbf16> to vector<16x784xf32>
    %c0_1 = arith.constant 0 : index
    %c0_2 = arith.constant 0 : index
    %2 = vector.load %arg2[%c0_1, %c0_2] : memref<1x784xf32, #tpu.memory_space<vmem>>, vector<1x784xf32>
    %3 = vector.broadcast %2 : vector<1x784xf32> to vector<16x784xf32>
    %4 = arith.addf %1, %3 : vector<16x784xf32>
    %cst = arith.constant 0.000000e+00 : f32
    %cst_3 = arith.constant 1.000000e+00 : f32
    %5 = vector.broadcast %cst : f32 to vector<16x784xf32>
    %6 = arith.maximumf %5, %4 : vector<16x784xf32>
    %7 = vector.broadcast %cst_3 : f32 to vector<16x784xf32>
    %8 = arith.minimumf %7, %6 : vector<16x784xf32>
    %9 = arith.truncf %8 : vector<16x784xf32> to vector<16x784xbf16>
    %c0_4 = arith.constant 0 : index
    %c0_5 = arith.constant 0 : index
    %10 = vector.load %arg3[%c0_4, %c0_5] : memref<784x128xbf16, #tpu.memory_space<vmem>>, vector<784x128xbf16>
    %cst_6 = arith.constant dense<0.000000e+00> : vector<16x128xf32>
    %11 = tpu.matmul %9, %10, %cst_6 {dimension_numbers = #tpu.dot_dimension_numbers<[1], [0], [0], [1], [0, 0, 1, 1], [], []>} : vector<16x784xbf16>, vector<784x128xbf16>, vector<16x128xf32> -> vector<16x128xf32>
    %c0_7 = arith.constant 0 : index
    %c0_8 = arith.constant 0 : index
    %12 = vector.load %arg4[%c0_7, %c0_8] : memref<1x128xf32, #tpu.memory_space<vmem>>, vector<1x128xf32>
    %13 = vector.broadcast %12 : vector<1x128xf32> to vector<16x128xf32>
    %14 = arith.addf %11, %13 : vector<16x128xf32>
    %cst_9 = arith.constant 0.000000e+00 : f32
    %15 = vector.broadcast %cst_9 : f32 to vector<16x128xf32>
    %16 = arith.maximumf %14, %15 : vector<16x128xf32>
    %17 = arith.truncf %16 : vector<16x128xf32> to vector<16x128xbf16>
    %c0_10 = arith.constant 0 : index
    %c0_11 = arith.constant 0 : index
    %18 = vector.load %arg5[%c0_10, %c0_11] : memref<128x128xbf16, #tpu.memory_space<vmem>>, vector<128x128xbf16>
    %cst_12 = arith.constant dense<0.000000e+00> : vector<16x128xf32>
    %19 = tpu.matmul %17, %18, %cst_12 {dimension_numbers = #tpu.dot_dimension_numbers<[1], [0], [0], [1], [0, 0, 1, 1], [], []>} : vector<16x128xbf16>, vector<128x128xbf16>, vector<16x128xf32> -> vector<16x128xf32>
    %c0_13 = arith.constant 0 : index
    %c0_14 = arith.constant 0 : index
    %20 = vector.load %arg6[%c0_13, %c0_14] : memref<1x128xf32, #tpu.memory_space<vmem>>, vector<1x128xf32>
    %21 = vector.broadcast %20 : vector<1x128xf32> to vector<16x128xf32>
    %22 = arith.addf %19, %21 : vector<16x128xf32>
    %cst_15 = arith.constant 0.000000e+00 : f32
    %23 = vector.broadcast %cst_15 : f32 to vector<16x128xf32>
    %24 = arith.maximumf %22, %23 : vector<16x128xf32>
    %25 = arith.truncf %24 : vector<16x128xf32> to vector<16x128xbf16>
    %c0_16 = arith.constant 0 : index
    %c0_17 = arith.constant 0 : index
    %26 = vector.load %arg7[%c0_16, %c0_17] : memref<128x10xbf16, #tpu.memory_space<vmem>>, vector<128x10xbf16>
    %cst_18 = arith.constant dense<0.000000e+00> : vector<16x10xf32>
    %27 = tpu.matmul %25, %26, %cst_18 {dimension_numbers = #tpu.dot_dimension_numbers<[1], [0], [0], [1], [0, 0, 1, 1], [], []>} : vector<16x128xbf16>, vector<128x10xbf16>, vector<16x10xf32> -> vector<16x10xf32>
    %c0_19 = arith.constant 0 : index
    %c0_20 = arith.constant 0 : index
    %28 = vector.load %arg8[%c0_19, %c0_20] : memref<1x10xf32, #tpu.memory_space<vmem>>, vector<1x10xf32>
    %29 = vector.broadcast %28 : vector<1x10xf32> to vector<16x10xf32>
    %30 = arith.addf %27, %29 : vector<16x10xf32>
    %c0_21 = arith.constant 0 : index
    %c0_22 = arith.constant 0 : index
    %31 = vector.load %arg9[%c0_21, %c0_22] : memref<16x10xf32, #tpu.memory_space<vmem>>, vector<16x10xf32>
    tpu.vector_store %arg9[%c0_21, %c0_22], %30 {strides = array<i32>} : memref<16x10xf32, #tpu.memory_space<vmem>>, vector<16x10xf32>,
    return
  }
  func.func @transform_0(%arg0: i32) -> (i32, i32) {
    %c0_i32 = arith.constant 0 : i32
    %c0_i32_0 = arith.constant 0 : i32
    return %arg0, %c0_i32 : i32, i32
  }
  func.func @transform_1(%arg0: i32) -> (i32, i32) {
    %c0_i32 = arith.constant 0 : i32
    %c0_i32_0 = arith.constant 0 : i32
    %c0_i32_1 = arith.constant 0 : i32
    return %c0_i32, %c0_i32_0 : i32, i32
  }
  func.func @transform_2(%arg0: i32) -> (i32, i32) {
    %c0_i32 = arith.constant 0 : i32
    %c0_i32_0 = arith.constant 0 : i32
    %c0_i32_1 = arith.constant 0 : i32
    return %c0_i32, %c0_i32_0 : i32, i32
  }
  func.func @transform_3(%arg0: i32) -> (i32, i32) {
    %c0_i32 = arith.constant 0 : i32
    %c0_i32_0 = arith.constant 0 : i32
    %c0_i32_1 = arith.constant 0 : i32
    return %c0_i32, %c0_i32_0 : i32, i32
  }
  func.func @transform_4(%arg0: i32) -> (i32, i32) {
    %c0_i32 = arith.constant 0 : i32
    %c0_i32_0 = arith.constant 0 : i32
    %c0_i32_1 = arith.constant 0 : i32
    return %c0_i32, %c0_i32_0 : i32, i32
  }
  func.func @transform_5(%arg0: i32) -> (i32, i32) {
    %c0_i32 = arith.constant 0 : i32
    %c0_i32_0 = arith.constant 0 : i32
    %c0_i32_1 = arith.constant 0 : i32
    return %c0_i32, %c0_i32_0 : i32, i32
  }
  func.func @transform_6(%arg0: i32) -> (i32, i32) {
    %c0_i32 = arith.constant 0 : i32
    %c0_i32_0 = arith.constant 0 : i32
    %c0_i32_1 = arith.constant 0 : i32
    return %c0_i32, %c0_i32_0 : i32, i32
  }
  func.func @transform_7(%arg0: i32) -> (i32, i32) {
    %c0_i32 = arith.constant 0 : i32
    %c0_i32_0 = arith.constant 0 : i32
    %c0_i32_1 = arith.constant 0 : i32
    return %c0_i32, %c0_i32_0 : i32, i32
  }
  func.func @transform_8(%arg0: i32) -> (i32, i32) {
    %c0_i32 = arith.constant 0 : i32
    %c0_i32_0 = arith.constant 0 : i32
    return %arg0, %c0_i32 : i32, i32
  }
}

</mosaic_0001>

<llo_original>
// kernel: net_forward.1
$region0: #{net_forward.1}
  #allocation0 [shape = 'u32[]', space=smem, size = 0x4, offset = 0x4, fixed_abs, tag = 'smem constant byte address 0x4 - core index']
  #allocation1 [shape = 'u32[72,128]{1,0:T(1,128)}', space=vmem, size = 0x9000, scoped, tag = 'internal scratch']
  %s0 = inlined_call_operand.vmem [shape: bf16[16,784], index: 0, kind: input, shape index: {}]
  %s1 = inlined_call_operand.vmem [shape: f32[1,784], index: 1, kind: input, shape index: {}]
  %s2 = inlined_call_operand.vmem [shape: bf16[784,128], index: 2, kind: input, shape index: {}]
  %s3 = inlined_call_operand.vmem [shape: f32[1,128], index: 3, kind: input, shape index: {}]
  %s4 = inlined_call_operand.vmem [shape: bf16[128,128], index: 4, kind: input, shape index: {}]
  %s5 = inlined_call_operand.vmem [shape: f32[1,128], index: 5, kind: input, shape index: {}]
  %s6 = inlined_call_operand.vmem [shape: bf16[128,10], index: 6, kind: input, shape index: {}]
  %s7 = inlined_call_operand.vmem [shape: f32[1,10], index: 7, kind: input, shape index: {}]
  %s8 = inlined_call_operand.vmem [shape: f32[16,10], index: 8, kind: output, shape index: {}]
  %s9 = sld [smem:[#allocation0]]
  $region42: #{net_forward.1} parent=0
    _
  %s11 = ssub.s32 1, %s9
  %s12 = scalar_select 0, %s11, %s9
  // Predicated region
  $region2: #{net_forward.1} parent=0 // pred_check
    _
  $region3: #{net_forward.1} parent=0 // pred_check_branch
    %14 = sbr.rel (0) target = $region5
  $region4: #{net_forward.1} parent=0 // pred_region
    _
  $region5: #{net_forward.1} parent=0 // pred_fallthru
    _
  // Predicated region
  $region6: #{net_forward.1} parent=0 // pred_check
    _
  $region7: #{net_forward.1} parent=0 // pred_check_branch
    %16 = sbr.rel (0) target = $region9
  $region8: #{net_forward.1} parent=0 // pred_region
    _
  $region9: #{net_forward.1} parent=0 // pred_fallthru
    _
  // Predicated region
  $region10: #{net_forward.1} parent=0 // pred_check
    _
  $region11: #{net_forward.1} parent=0 // pred_check_branch
    %18 = sbr.rel (0) target = $region13
  $region12: #{net_forward.1} parent=0 // pred_region
    _
  $region13: #{net_forward.1} parent=0 // pred_fallthru
    _
  // Predicated region
  $region14: #{net_forward.1} parent=0 // pred_check
    _
  $region15: #{net_forward.1} parent=0 // pred_check_branch
    %20 = sbr.rel (0) target = $region17
  $region16: #{net_forward.1} parent=0 // pred_region
    _
  $region17: #{net_forward.1} parent=0 // pred_fallthru
    _
  // Predicated region
  $region18: #{net_forward.1} parent=0 // pred_check
    _
  $region19: #{net_forward.1} parent=0 // pred_check_branch
    %22 = sbr.rel (0) target = $region21
  $region20: #{net_forward.1} parent=0 // pred_region
    _
  $region21: #{net_forward.1} parent=0 // pred_fallthru
    _
  // Predicated region
  $region22: #{net_forward.1} parent=0 // pred_check
    _
  $region23: #{net_forward.1} parent=0 // pred_check_branch
    %24 = sbr.rel (0) target = $region25
  $region24: #{net_forward.1} parent=0 // pred_region
    _
  $region25: #{net_forward.1} parent=0 // pred_fallthru
    _
  // Predicated region
  $region26: #{net_forward.1} parent=0 // pred_check
    _
  $region27: #{net_forward.1} parent=0 // pred_check_branch
    %26 = sbr.rel (0) target = $region29
  $region28: #{net_forward.1} parent=0 // pred_region
    _
  $region29: #{net_forward.1} parent=0 // pred_fallthru
    _
  // Predicated region
  $region30: #{net_forward.1} parent=0 // pred_check
    _
  $region31: #{net_forward.1} parent=0 // pred_check_branch
    %28 = sbr.rel (0) target = $region33
  $region32: #{net_forward.1} parent=0 // pred_region
    _
  $region33: #{net_forward.1} parent=0 // pred_fallthru
    _
  %v30 = vld [vmem:[%s0] sm:$0xff]
  %v31 = vld [vmem:[%s0 + $0x8] sm:$0xff]
  %v32 = vld [vmem:[%s0 + $0x10] sm:$0xff]
  %v33 = vld [vmem:[%s0 + $0x18] sm:$0xf]
  %v34 = vld [vmem:[%s0 + $0x1c] sm:$0xff]
  %v35 = vld [vmem:[%s0 + $0x24] sm:$0xff]
  %v36 = vld [vmem:[%s0 + $0x2c] sm:$0xff]
  %v37 = vld [vmem:[%s0 + $0x34] sm:$0xf]
  %v38 = vunpack.c.l.bf16 %v30
  %v39 = vunpack.c.h.bf16 %v30
  %v40 = vunpack.c.l.bf16 %v31
  %v41 = vunpack.c.h.bf16 %v31
  %v42 = vunpack.c.l.bf16 %v32
  %v43 = vunpack.c.h.bf16 %v32
  %v44 = vunpack.c.l.bf16 %v33
  %v45 = vunpack.c.l.bf16 %v34
  %v46 = vunpack.c.h.bf16 %v34
  %v47 = vunpack.c.l.bf16 %v35
  %v48 = vunpack.c.h.bf16 %v35
  %v49 = vunpack.c.l.bf16 %v36
  %v50 = vunpack.c.h.bf16 %v36
  %v51 = vunpack.c.l.bf16 %v37
  %v52 = vld [vmem:[%s1] sm:$0x7f]
  %v54 = vperm.slane %v52, 0
  %v55 = vperm.slane %v52, 1
  %v56 = vperm.slane %v52, 2
  %v57 = vperm.slane %v52, 3
  %v58 = vperm.slane %v52, 4
  %v59 = vperm.slane %v52, 5
  %v60 = vperm.slane %v52, 6
  %v68 = vadd.f32 %v38, %v54
  %v69 = vadd.f32 %v39, %v55
  %v70 = vadd.f32 %v40, %v56
  %v71 = vadd.f32 %v41, %v57
  %v72 = vadd.f32 %v42, %v58
  %v73 = vadd.f32 %v43, %v59
  %v74 = vadd.f32 %v44, %v60
  %v75 = vadd.f32 %v45, %v54
  %v76 = vadd.f32 %v46, %v55
  %v77 = vadd.f32 %v47, %v56
  %v78 = vadd.f32 %v48, %v57
  %v79 = vadd.f32 %v49, %v58
  %v80 = vadd.f32 %v50, %v59
  %v81 = vadd.f32 %v51, %v60
  %v82 = vmax.f32 %v68, 0.0
  %v83 = vmax.f32 %v69, 0.0
  %v84 = vmax.f32 %v70, 0.0
  %v85 = vmax.f32 %v71, 0.0
  %v86 = vmax.f32 %v72, 0.0
  %v87 = vmax.f32 %v73, 0.0
  %v88 = vmax.f32 %v74, 0.0
  %v89 = vmax.f32 %v75, 0.0
  %v90 = vmax.f32 %v76, 0.0
  %v91 = vmax.f32 %v77, 0.0
  %v92 = vmax.f32 %v78, 0.0
  %v93 = vmax.f32 %v79, 0.0
  %v94 = vmax.f32 %v80, 0.0
  %v95 = vmax.f32 %v81, 0.0
  %v96 = vmin.f32 %v82, 1.0
  %v97 = vmin.f32 %v83, 1.0
  %v98 = vmin.f32 %v84, 1.0
  %v99 = vmin.f32 %v85, 1.0
  %v100 = vmin.f32 %v86, 1.0
  %v101 = vmin.f32 %v87, 1.0
  %v102 = vmin.f32 %v88, 1.0
  %v103 = vmin.f32 %v89, 1.0
  %v104 = vmin.f32 %v90, 1.0
  %v105 = vmin.f32 %v91, 1.0
  %v106 = vmin.f32 %v92, 1.0
  %v107 = vmin.f32 %v93, 1.0
  %v108 = vmin.f32 %v94, 1.0
  %v109 = vmin.f32 %v95, 1.0
  %v110 = vpack.c.bf16 %v103, %v96
  %v111 = vpack.c.bf16 %v104, %v97
  %v112 = vpack.c.bf16 %v105, %v98
  %v113 = vpack.c.bf16 %v106, %v99
  %v114 = vpack.c.bf16 %v107, %v100
  %v115 = vpack.c.bf16 %v108, %v101
  %v116 = vpack.c.bf16 %v109, %v102
  %v117 = vld [vmem:[%s2] sm:$0xf]
  %v118 = vld [vmem:[%s2 + $0x4] sm:$0xf]
  %v119 = vld [vmem:[%s2 + $0x8] sm:$0xf]
  %v120 = vld [vmem:[%s2 + $0xc] sm:$0xf]
  %v121 = vld [vmem:[%s2 + $0x10] sm:$0xf]
  %v122 = vld [vmem:[%s2 + $0x14] sm:$0xf]
  %v123 = vld [vmem:[%s2 + $0x18] sm:$0xf]
  %v124 = vld [vmem:[%s2 + $0x1c] sm:$0xf]
  %v125 = vld [vmem:[%s2 + $0x20] sm:$0xf]
  %v126 = vld [vmem:[%s2 + $0x24] sm:$0xf]
  %v127 = vld [vmem:[%s2 + $0x28] sm:$0xf]
  %v128 = vld [vmem:[%s2 + $0x2c] sm:$0xf]
  %v129 = vld [vmem:[%s2 + $0x30] sm:$0xf]
  %v130 = vld [vmem:[%s2 + $0x34] sm:$0xf]
  %v131 = vld [vmem:[%s2 + $0x38] sm:$0xf]
  %v132 = vld [vmem:[%s2 + $0x3c] sm:$0xf]
  %v133 = vld [vmem:[%s2 + $0x40] sm:$0xf]
  %v134 = vld [vmem:[%s2 + $0x44] sm:$0xf]
  %v135 = vld [vmem:[%s2 + $0x48] sm:$0xf]
  %v136 = vld [vmem:[%s2 + $0x4c] sm:$0xf]
  %v137 = vld [vmem:[%s2 + $0x50] sm:$0xf]
  %v138 = vld [vmem:[%s2 + $0x54] sm:$0xf]
  %v139 = vld [vmem:[%s2 + $0x58] sm:$0xf]
  %v140 = vld [vmem:[%s2 + $0x5c] sm:$0xf]
  %v141 = vld [vmem:[%s2 + $0x60] sm:$0xf]
  %v142 = vld [vmem:[%s2 + $0x64] sm:$0xf]
  %v143 = vld [vmem:[%s2 + $0x68] sm:$0xf]
  %v144 = vld [vmem:[%s2 + $0x6c] sm:$0xf]
  %v145 = vld [vmem:[%s2 + $0x70] sm:$0xf]
  %v146 = vld [vmem:[%s2 + $0x74] sm:$0xf]
  %v147 = vld [vmem:[%s2 + $0x78] sm:$0xf]
  %v148 = vld [vmem:[%s2 + $0x7c] sm:$0xf]
  %v149 = vld [vmem:[%s2 + $0x80] sm:$0xf]
  %v150 = vld [vmem:[%s2 + $0x84] sm:$0xf]
  %v151 = vld [vmem:[%s2 + $0x88] sm:$0xf]
  %v152 = vld [vmem:[%s2 + $0x8c] sm:$0xf]
  %v153 = vld [vmem:[%s2 + $0x90] sm:$0xf]
  %v154 = vld [vmem:[%s2 + $0x94] sm:$0xf]
  %v155 = vld [vmem:[%s2 + $0x98] sm:$0xf]
  %v156 = vld [vmem:[%s2 + $0x9c] sm:$0xf]
  %v157 = vld [vmem:[%s2 + $0xa0] sm:$0xf]
  %v158 = vld [vmem:[%s2 + $0xa4] sm:$0xf]
  %v159 = vld [vmem:[%s2 + $0xa8] sm:$0xf]
  %v160 = vld [vmem:[%s2 + $0xac] sm:$0xf]
  %v161 = vld [vmem:[%s2 + $0xb0] sm:$0xf]
  %v162 = vld [vmem:[%s2 + $0xb4] sm:$0xf]
  %v163 = vld [vmem:[%s2 + $0xb8] sm:$0xf]
  %v164 = vld [vmem:[%s2 + $0xbc] sm:$0xf]
  %v165 = vld [vmem:[%s2 + $0xc0] sm:$0xf]
  %v166 = vld [vmem:[%s2 + $0xc4] sm:$0xf]
  %v167 = vld [vmem:[%s2 + $0xc8] sm:$0xf]
  %v168 = vld [vmem:[%s2 + $0xcc] sm:$0xf]
  %v169 = vld [vmem:[%s2 + $0xd0] sm:$0xf]
  %v170 = vld [vmem:[%s2 + $0xd4] sm:$0xf]
  %v171 = vld [vmem:[%s2 + $0xd8] sm:$0xf]
  %v172 = vld [vmem:[%s2 + $0xdc] sm:$0xf]
  %v173 = vld [vmem:[%s2 + $0xe0] sm:$0xf]
  %v174 = vld [vmem:[%s2 + $0xe4] sm:$0xf]
  %v175 = vld [vmem:[%s2 + $0xe8] sm:$0xf]
  %v176 = vld [vmem:[%s2 + $0xec] sm:$0xf]
  %v177 = vld [vmem:[%s2 + $0xf0] sm:$0xf]
  %v178 = vld [vmem:[%s2 + $0xf4] sm:$0xf]
  %v179 = vld [vmem:[%s2 + $0xf8] sm:$0xf]
  %v180 = vld [vmem:[%s2 + $0xfc] sm:$0xf]
  %v181 = vld [vmem:[%s2 + $0x100] sm:$0xf]
  %v182 = vld [vmem:[%s2 + $0x104] sm:$0xf]
  %v183 = vld [vmem:[%s2 + $0x108] sm:$0xf]
  %v184 = vld [vmem:[%s2 + $0x10c] sm:$0xf]
  %v185 = vld [vmem:[%s2 + $0x110] sm:$0xf]
  %v186 = vld [vmem:[%s2 + $0x114] sm:$0xf]
  %v187 = vld [vmem:[%s2 + $0x118] sm:$0xf]
  %v188 = vld [vmem:[%s2 + $0x11c] sm:$0xf]
  %v189 = vld [vmem:[%s2 + $0x120] sm:$0xf]
  %v190 = vld [vmem:[%s2 + $0x124] sm:$0xf]
  %v191 = vld [vmem:[%s2 + $0x128] sm:$0xf]
  %v192 = vld [vmem:[%s2 + $0x12c] sm:$0xf]
  %v193 = vld [vmem:[%s2 + $0x130] sm:$0xf]
  %v194 = vld [vmem:[%s2 + $0x134] sm:$0xf]
  %v195 = vld [vmem:[%s2 + $0x138] sm:$0xf]
  %v196 = vld [vmem:[%s2 + $0x13c] sm:$0xf]
  %v197 = vld [vmem:[%s2 + $0x140] sm:$0xf]
  %v198 = vld [vmem:[%s2 + $0x144] sm:$0xf]
  %v199 = vld [vmem:[%s2 + $0x148] sm:$0xf]
  %v200 = vld [vmem:[%s2 + $0x14c] sm:$0xf]
  %v201 = vld [vmem:[%s2 + $0x150] sm:$0xf]
  %v202 = vld [vmem:[%s2 + $0x154] sm:$0xf]
  %v203 = vld [vmem:[%s2 + $0x158] sm:$0xf]
  %v204 = vld [vmem:[%s2 + $0x15c] sm:$0xf]
  %v205 = vld [vmem:[%s2 + $0x160] sm:$0xf]
  %v206 = vld [vmem:[%s2 + $0x164] sm:$0xf]
  %v207 = vld [vmem:[%s2 + $0x168] sm:$0xf]
  %v208 = vld [vmem:[%s2 + $0x16c] sm:$0xf]
  %v209 = vld [vmem:[%s2 + $0x170] sm:$0xf]
  %v210 = vld [vmem:[%s2 + $0x174] sm:$0xf]
  %v211 = vld [vmem:[%s2 + $0x178] sm:$0xf]
  %v212 = vld [vmem:[%s2 + $0x17c] sm:$0xf]
  %v213 = vld [vmem:[%s2 + $0x180] sm:$0xf]
  %v214 = vld [vmem:[%s2 + $0x184] sm:$0xf]
  %v215 = vld [vmem:[%s3] sm:$0x1]
  %v217 = vperm.slane %v215, 0
  %v317 = vunpack.c.l.b16 %v117
  %v318 = vunpack.c.l.b16 %v118
  %v319 = vunpack.c.l.b16 %v119
  %v320 = vunpack.c.l.b16 %v120
  %v321 = vunpack.c.l.b16 %v121
  %v322 = vunpack.c.l.b16 %v122
  %v323 = vunpack.c.l.b16 %v123
  %v324 = vunpack.c.l.b16 %v124
  %v325 = vunpack.c.l.b16 %v125
  %v326 = vunpack.c.l.b16 %v126
  %v327 = vunpack.c.l.b16 %v127
  %v328 = vunpack.c.l.b16 %v128
  %v329 = vunpack.c.l.b16 %v129
  %v330 = vunpack.c.l.b16 %v130
  %v331 = vunpack.c.l.b16 %v131
  %v332 = vunpack.c.l.b16 %v132
  %v333 = vunpack.c.l.b16 %v133
  %v334 = vunpack.c.l.b16 %v134
  %v335 = vunpack.c.l.b16 %v135
  %v336 = vunpack.c.l.b16 %v136
  %v337 = vunpack.c.l.b16 %v137
  %v338 = vunpack.c.l.b16 %v138
  %v339 = vunpack.c.l.b16 %v139
  %v340 = vunpack.c.l.b16 %v140
  %v341 = vunpack.c.l.b16 %v141
  %v342 = vunpack.c.l.b16 %v142
  %v343 = vunpack.c.l.b16 %v143
  %v344 = vunpack.c.l.b16 %v144
  %v345 = vunpack.c.l.b16 %v145
  %v346 = vunpack.c.l.b16 %v146
  %v347 = vunpack.c.l.b16 %v147
  %v348 = vunpack.c.l.b16 %v148
  %v349 = vunpack.c.l.b16 %v149
  %v350 = vunpack.c.l.b16 %v150
  %v351 = vunpack.c.l.b16 %v151
  %v352 = vunpack.c.l.b16 %v152
  %v353 = vunpack.c.l.b16 %v153
  %v354 = vunpack.c.l.b16 %v154
  %v355 = vunpack.c.l.b16 %v155
  %v356 = vunpack.c.l.b16 %v156
  %v357 = vunpack.c.l.b16 %v157
  %v358 = vunpack.c.l.b16 %v158
  %v359 = vunpack.c.l.b16 %v159
  %v360 = vunpack.c.l.b16 %v160
  %v361 = vunpack.c.l.b16 %v161
  %v362 = vunpack.c.l.b16 %v162
  %v363 = vunpack.c.l.b16 %v163
  %v364 = vunpack.c.l.b16 %v164
  %v365 = vunpack.c.l.b16 %v165
  %v366 = vunpack.c.l.b16 %v166
  %v367 = vunpack.c.l.b16 %v167
  %v368 = vunpack.c.l.b16 %v168
  %v369 = vunpack.c.l.b16 %v169
  %v370 = vunpack.c.l.b16 %v170
  %v371 = vunpack.c.l.b16 %v171
  %v372 = vunpack.c.l.b16 %v172
  %v373 = vunpack.c.l.b16 %v173
  %v374 = vunpack.c.l.b16 %v174
  %v375 = vunpack.c.l.b16 %v175
  %v376 = vunpack.c.l.b16 %v176
  %v377 = vunpack.c.l.b16 %v177
  %v378 = vunpack.c.l.b16 %v178
  %v379 = vunpack.c.l.b16 %v179
  %v380 = vunpack.c.l.b16 %v180
  %v381 = vunpack.c.l.b16 %v181
  %v382 = vunpack.c.l.b16 %v182
  %v383 = vunpack.c.l.b16 %v183
  %v384 = vunpack.c.l.b16 %v184
  %v385 = vunpack.c.l.b16 %v185
  %v386 = vunpack.c.l.b16 %v186
  %v387 = vunpack.c.l.b16 %v187
  %v388 = vunpack.c.l.b16 %v188
  %v389 = vunpack.c.l.b16 %v189
  %v390 = vunpack.c.l.b16 %v190
  %v391 = vunpack.c.l.b16 %v191
  %v392 = vunpack.c.l.b16 %v192
  %v393 = vunpack.c.l.b16 %v193
  %v394 = vunpack.c.l.b16 %v194
  %v395 = vunpack.c.l.b16 %v195
  %v396 = vunpack.c.l.b16 %v196
  %v397 = vunpack.c.l.b16 %v197
  %v398 = vunpack.c.l.b16 %v198
  %v399 = vunpack.c.l.b16 %v199
  %v400 = vunpack.c.l.b16 %v200
  %v401 = vunpack.c.l.b16 %v201
  %v402 = vunpack.c.l.b16 %v202
  %v403 = vunpack.c.l.b16 %v203
  %v404 = vunpack.c.l.b16 %v204
  %v405 = vunpack.c.l.b16 %v205
  %v406 = vunpack.c.l.b16 %v206
  %v407 = vunpack.c.l.b16 %v207
  %v408 = vunpack.c.l.b16 %v208
  %v409 = vunpack.c.l.b16 %v209
  %v410 = vunpack.c.l.b16 %v210
  %v411 = vunpack.c.l.b16 %v211
  %v412 = vunpack.c.l.b16 %v212
  %v413 = vunpack.c.l.b16 %v213
  %v414 = vunpack.c.l.b16 %v214
  %v415 = vpack.c.b16 %v318, %v317
  %v416 = vpack.c.b16 %v320, %v319
  %v417 = vpack.c.b16 %v322, %v321
  %v418 = vpack.c.b16 %v324, %v323
  %v419 = vpack.c.b16 %v326, %v325
  %v420 = vpack.c.b16 %v328, %v327
  %v421 = vpack.c.b16 %v330, %v329
  %v422 = vpack.c.b16 %v332, %v331
  %v423 = vpack.c.b16 %v334, %v333
  %v424 = vpack.c.b16 %v336, %v335
  %v425 = vpack.c.b16 %v338, %v337
  %v426 = vpack.c.b16 %v340, %v339
  %v427 = vpack.c.b16 %v342, %v341
  %v428 = vpack.c.b16 %v344, %v343
  %v429 = vpack.c.b16 %v346, %v345
  %v430 = vpack.c.b16 %v348, %v347
  %v431 = vpack.c.b16 %v350, %v349
  %v432 = vpack.c.b16 %v352, %v351
  %v433 = vpack.c.b16 %v354, %v353
  %v434 = vpack.c.b16 %v356, %v355
  %v435 = vpack.c.b16 %v358, %v357
  %v436 = vpack.c.b16 %v360, %v359
  %v437 = vpack.c.b16 %v362, %v361
  %v438 = vpack.c.b16 %v364, %v363
  %v439 = vpack.c.b16 %v366, %v365
  %v440 = vpack.c.b16 %v368, %v367
  %v441 = vpack.c.b16 %v370, %v369
  %v442 = vpack.c.b16 %v372, %v371
  %v443 = vpack.c.b16 %v374, %v373
  %v444 = vpack.c.b16 %v376, %v375
  %v445 = vpack.c.b16 %v378, %v377
  %v446 = vpack.c.b16 %v380, %v379
  %v447 = vpack.c.b16 %v382, %v381
  %v448 = vpack.c.b16 %v384, %v383
  %v449 = vpack.c.b16 %v386, %v385
  %v450 = vpack.c.b16 %v388, %v387
  %v451 = vpack.c.b16 %v390, %v389
  %v452 = vpack.c.b16 %v392, %v391
  %v453 = vpack.c.b16 %v394, %v393
  %v454 = vpack.c.b16 %v396, %v395
  %v455 = vpack.c.b16 %v398, %v397
  %v456 = vpack.c.b16 %v400, %v399
  %v457 = vpack.c.b16 %v402, %v401
  %v458 = vpack.c.b16 %v404, %v403
  %v459 = vpack.c.b16 %v406, %v405
  %v460 = vpack.c.b16 %v408, %v407
  %v461 = vpack.c.b16 %v410, %v409
  %v462 = vpack.c.b16 %v412, %v411
  %v463 = vpack.c.b16 %v414, %v413
  %vm513 = vcmask 130048
  %v515 = vsel %vm513, %v116, 0
  %517 = vmatpush.bf16.msra.mxu0 %v422
  %518 = vmatpush.bf16.msra.mxu0 %v421
  %519 = vmatpush.bf16.msra.mxu0 %v420
  %520 = vmatpush.bf16.msra.mxu0 %v419
  %521 = vmatpush.bf16.msra.mxu0 %v418
  %522 = vmatpush.bf16.msra.mxu0 %v417
  %523 = vmatpush.bf16.msra.mxu0 %v416
  %524 = vmatpush.bf16.msra.mxu0 %v415
  %525 = vmatmul.bf16.gmra.mxu0 %v110
  %v526 = vpop.f32.mrf.mxu0
  %v527 = vadd.f32 %v217, %v526
  %v528 = vpop.f32.mrf.mxu0
  %v529 = vadd.f32 %v217, %v528
  %530 = vdwg.mxu0
  %531 = vmatpush.bf16.msra.mxu0 %v430
  %532 = vmatpush.bf16.msra.mxu0 %v429
  %533 = vmatpush.bf16.msra.mxu0 %v428
  %534 = vmatpush.bf16.msra.mxu0 %v427
  %535 = vmatpush.bf16.msra.mxu0 %v426
  %536 = vmatpush.bf16.msra.mxu0 %v425
  %537 = vmatpush.bf16.msra.mxu0 %v424
  %538 = vmatpush.bf16.msra.mxu0 %v423
  %539 = vmatmul.bf16.gmra.mxu0 %v111
  %v540 = vpop.f32.mrf.mxu0
  %v541 = vadd.f32 %v527, %v540
  %v542 = vpop.f32.mrf.mxu0
  %v543 = vadd.f32 %v529, %v542
  %544 = vdwg.mxu0
  %545 = vmatpush.bf16.msra.mxu0 %v438
  %546 = vmatpush.bf16.msra.mxu0 %v437
  %547 = vmatpush.bf16.msra.mxu0 %v436
  %548 = vmatpush.bf16.msra.mxu0 %v435
  %549 = vmatpush.bf16.msra.mxu0 %v434
  %550 = vmatpush.bf16.msra.mxu0 %v433
  %551 = vmatpush.bf16.msra.mxu0 %v432
  %552 = vmatpush.bf16.msra.mxu0 %v431
  %553 = vmatmul.bf16.gmra.mxu0 %v112
  %v554 = vpop.f32.mrf.mxu0
  %v555 = vadd.f32 %v541, %v554
  %v556 = vpop.f32.mrf.mxu0
  %v557 = vadd.f32 %v543, %v556
  %558 = vdwg.mxu0
  %559 = vmatpush.bf16.msra.mxu0 %v446
  %560 = vmatpush.bf16.msra.mxu0 %v445
  %561 = vmatpush.bf16.msra.mxu0 %v444
  %562 = vmatpush.bf16.msra.mxu0 %v443
  %563 = vmatpush.bf16.msra.mxu0 %v442
  %564 = vmatpush.bf16.msra.mxu0 %v441
  %565 = vmatpush.bf16.msra.mxu0 %v440
  %566 = vmatpush.bf16.msra.mxu0 %v439
  %567 = vmatmul.bf16.gmra.mxu0 %v113
  %v568 = vpop.f32.mrf.mxu0
  %v569 = vadd.f32 %v555, %v568
  %v570 = vpop.f32.mrf.mxu0
  %v571 = vadd.f32 %v557, %v570
  %572 = vdwg.mxu0
  %573 = vmatpush.bf16.msra.mxu0 %v454
  %574 = vmatpush.bf16.msra.mxu0 %v453
  %575 = vmatpush.bf16.msra.mxu0 %v452
  %576 = vmatpush.bf16.msra.mxu0 %v451
  %577 = vmatpush.bf16.msra.mxu0 %v450
  %578 = vmatpush.bf16.msra.mxu0 %v449
  %579 = vmatpush.bf16.msra.mxu0 %v448
  %580 = vmatpush.bf16.msra.mxu0 %v447
  %581 = vmatmul.bf16.gmra.mxu0 %v114
  %v582 = vpop.f32.mrf.mxu0
  %v583 = vadd.f32 %v569, %v582
  %v584 = vpop.f32.mrf.mxu0
  %v585 = vadd.f32 %v571, %v584
  %586 = vdwg.mxu0
  %587 = vmatpush.bf16.msra.mxu0 %v462
  %588 = vmatpush.bf16.msra.mxu0 %v461
  %589 = vmatpush.bf16.msra.mxu0 %v460
  %590 = vmatpush.bf16.msra.mxu0 %v459
  %591 = vmatpush.bf16.msra.mxu0 %v458
  %592 = vmatpush.bf16.msra.mxu0 %v457
  %593 = vmatpush.bf16.msra.mxu0 %v456
  %594 = vmatpush.bf16.msra.mxu0 %v455
  %595 = vmatmul.bf16.gmra.mxu0 %v115
  %v596 = vpop.f32.mrf.mxu0
  %v597 = vadd.f32 %v583, %v596
  %v598 = vpop.f32.mrf.mxu0
  %v599 = vadd.f32 %v585, %v598
  %600 = vdwg.mxu0
  %601 = vmatpush.bf16.msra.mxu0 0
  %602 = vmatpush.bf16.msra.mxu0 0
  %603 = vmatpush.bf16.msra.mxu0 0
  %604 = vmatpush.bf16.msra.mxu0 0
  %605 = vmatpush.bf16.msra.mxu0 0
  %606 = vmatpush.bf16.msra.mxu0 0
  %607 = vmatpush.bf16.msra.mxu0 0
  %608 = vmatpush.bf16.msra.mxu0 %v463
  %609 = vmatmul.bf16.gmra.mxu0 %v515
  %v610 = vpop.f32.mrf.mxu0
  %v611 = vadd.f32 %v597, %v610
  %v612 = vpop.f32.mrf.mxu0
  %v613 = vadd.f32 %v599, %v612
  %614 = vdwg.mxu0
  %v615 = vmax.f32 %v611, 0.0
  %v616 = vmax.f32 %v613, 0.0
  %v617 = vpack.c.bf16 %v616, %v615
  %v618 = vld [vmem:[%s4] sm:$0xf]
  %v619 = vld [vmem:[%s4 + $0x4] sm:$0xf]
  %v620 = vld [vmem:[%s4 + $0x8] sm:$0xf]
  %v621 = vld [vmem:[%s4 + $0xc] sm:$0xf]
  %v622 = vld [vmem:[%s4 + $0x10] sm:$0xf]
  %v623 = vld [vmem:[%s4 + $0x14] sm:$0xf]
  %v624 = vld [vmem:[%s4 + $0x18] sm:$0xf]
  %v625 = vld [vmem:[%s4 + $0x1c] sm:$0xf]
  %v626 = vld [vmem:[%s4 + $0x20] sm:$0xf]
  %v627 = vld [vmem:[%s4 + $0x24] sm:$0xf]
  %v628 = vld [vmem:[%s4 + $0x28] sm:$0xf]
  %v629 = vld [vmem:[%s4 + $0x2c] sm:$0xf]
  %v630 = vld [vmem:[%s4 + $0x30] sm:$0xf]
  %v631 = vld [vmem:[%s4 + $0x34] sm:$0xf]
  %v632 = vld [vmem:[%s4 + $0x38] sm:$0xf]
  %v633 = vld [vmem:[%s4 + $0x3c] sm:$0xf]
  %v634 = vld [vmem:[%s5] sm:$0x1]
  %v636 = vperm.slane %v634, 0
  %v654 = vunpack.c.l.b16 %v618
  %v655 = vunpack.c.l.b16 %v619
  %v656 = vunpack.c.l.b16 %v620
  %v657 = vunpack.c.l.b16 %v621
  %v658 = vunpack.c.l.b16 %v622
  %v659 = vunpack.c.l.b16 %v623
  %v660 = vunpack.c.l.b16 %v624
  %v661 = vunpack.c.l.b16 %v625
  %v662 = vunpack.c.l.b16 %v626
  %v663 = vunpack.c.l.b16 %v627
  %v664 = vunpack.c.l.b16 %v628
  %v665 = vunpack.c.l.b16 %v629
  %v666 = vunpack.c.l.b16 %v630
  %v667 = vunpack.c.l.b16 %v631
  %v668 = vunpack.c.l.b16 %v632
  %v669 = vunpack.c.l.b16 %v633
  %v670 = vpack.c.b16 %v655, %v654
  %v671 = vpack.c.b16 %v657, %v656
  %v672 = vpack.c.b16 %v659, %v658
  %v673 = vpack.c.b16 %v661, %v660
  %v674 = vpack.c.b16 %v663, %v662
  %v675 = vpack.c.b16 %v665, %v664
  %v676 = vpack.c.b16 %v667, %v666
  %v677 = vpack.c.b16 %v669, %v668
  %686 = vmatpush.bf16.msra.mxu0 %v677
  %687 = vmatpush.bf16.msra.mxu0 %v676
  %688 = vmatpush.bf16.msra.mxu0 %v675
  %689 = vmatpush.bf16.msra.mxu0 %v674
  %690 = vmatpush.bf16.msra.mxu0 %v673
  %691 = vmatpush.bf16.msra.mxu0 %v672
  %692 = vmatpush.bf16.msra.mxu0 %v671
  %693 = vmatpush.bf16.msra.mxu0 %v670
  %694 = vmatmul.bf16.gmra.mxu0 %v617
  %v695 = vpop.f32.mrf.mxu0
  %v696 = vadd.f32 %v636, %v695
  %v697 = vpop.f32.mrf.mxu0
  %v698 = vadd.f32 %v636, %v697
  %699 = vdwg.mxu0
  %v700 = vmax.f32 %v696, 0.0
  %v701 = vmax.f32 %v698, 0.0
  %v702 = vpack.c.bf16 %v701, %v700
  %v703 = vld [vmem:[%s6] sm:$0xf]
  %v704 = vld [vmem:[%s6 + $0x4] sm:$0xf]
  %v705 = vld [vmem:[%s6 + $0x8] sm:$0xf]
  %v706 = vld [vmem:[%s6 + $0xc] sm:$0xf]
  %v707 = vld [vmem:[%s6 + $0x10] sm:$0xf]
  %v708 = vld [vmem:[%s6 + $0x14] sm:$0xf]
  %v709 = vld [vmem:[%s6 + $0x18] sm:$0xf]
  %v710 = vld [vmem:[%s6 + $0x1c] sm:$0xf]
  %v711 = vld [vmem:[%s6 + $0x20] sm:$0xf]
  %v712 = vld [vmem:[%s6 + $0x24] sm:$0xf]
  %v713 = vld [vmem:[%s6 + $0x28] sm:$0xf]
  %v714 = vld [vmem:[%s6 + $0x2c] sm:$0xf]
  %v715 = vld [vmem:[%s6 + $0x30] sm:$0xf]
  %v716 = vld [vmem:[%s6 + $0x34] sm:$0xf]
  %v717 = vld [vmem:[%s6 + $0x38] sm:$0xf]
  %v718 = vld [vmem:[%s6 + $0x3c] sm:$0xf]
  %v719 = vld [vmem:[%s7] sm:$0x1]
  %v721 = vperm.slane %v719, 0
  %v739 = vunpack.c.l.b16 %v703
  %v740 = vunpack.c.l.b16 %v704
  %v741 = vunpack.c.l.b16 %v705
  %v742 = vunpack.c.l.b16 %v706
  %v743 = vunpack.c.l.b16 %v707
  %v744 = vunpack.c.l.b16 %v708
  %v745 = vunpack.c.l.b16 %v709
  %v746 = vunpack.c.l.b16 %v710
  %v747 = vunpack.c.l.b16 %v711
  %v748 = vunpack.c.l.b16 %v712
  %v749 = vunpack.c.l.b16 %v713
  %v750 = vunpack.c.l.b16 %v714
  %v751 = vunpack.c.l.b16 %v715
  %v752 = vunpack.c.l.b16 %v716
  %v753 = vunpack.c.l.b16 %v717
  %v754 = vunpack.c.l.b16 %v718
  %v755 = vpack.c.b16 %v740, %v739
  %v756 = vpack.c.b16 %v742, %v741
  %v757 = vpack.c.b16 %v744, %v743
  %v758 = vpack.c.b16 %v746, %v745
  %v759 = vpack.c.b16 %v748, %v747
  %v760 = vpack.c.b16 %v750, %v749
  %v761 = vpack.c.b16 %v752, %v751
  %v762 = vpack.c.b16 %v754, %v753
  %771 = vmatpush.bf16.msra.mxu0 %v762
  %772 = vmatpush.bf16.msra.mxu0 %v761
  %773 = vmatpush.bf16.msra.mxu0 %v760
  %774 = vmatpush.bf16.msra.mxu0 %v759
  %775 = vmatpush.bf16.msra.mxu0 %v758
  %776 = vmatpush.bf16.msra.mxu0 %v757
  %777 = vmatpush.bf16.msra.mxu0 %v756
  %778 = vmatpush.bf16.msra.mxu0 %v755
  %779 = vmatmul.bf16.gmra.mxu0 %v702
  %v780 = vpop.f32.mrf.mxu0
  %v781 = vadd.f32 %v721, %v780
  %v782 = vpop.f32.mrf.mxu0
  %v783 = vadd.f32 %v721, %v782
  %784 = vdwg.mxu0
  %vm785 = vcmask 80896
  %786 = vst.msk [vmem:[%s8] sm:$0xff] %vm785, %v781
  %787 = vst.msk [vmem:[%s8 + $0x8] sm:$0xff] %vm785, %v783
  // Predicated region
  $region34: #{net_forward.1} parent=0 // pred_check
    _
  $region35: #{net_forward.1} parent=0 // pred_check_branch
    %789 = sbr.rel (0) target = $region37
  $region36: #{net_forward.1} parent=0 // pred_region
    _
  $region37: #{net_forward.1} parent=0 // pred_fallthru
    _
  // Predicated region
  $region38: #{net_forward.1} parent=0 // pred_check
    _
  $region39: #{net_forward.1} parent=0 // pred_check_branch
    %791 = sbr.rel (0) target = $region41
  $region40: #{net_forward.1} parent=0 // pred_region
    _
  $region41: #{net_forward.1} parent=0 // pred_fallthru
    _

</llo_original>
